<compile_context>
chip_gen: v7x
topology: tpu7x:2x2x1
jax: 0.10.0
libtpu: 0.0.40
codegen_flags: <defaults>
</compile_context>

<pallas_src>
import math

import jax
import jax.numpy as jnp
from jax.experimental import pallas as pl
from jax.experimental.pallas import tpu as pltpu

ALPHA = 0.25
GAMMA = 2  # Python int: (1-pt)**2 == (1-pt)*(1-pt), never exp/log pow


def _focal_loss_kernel(x_ref, t_ref, out_ref, acc_bce_ref, acc_w_ref):
    j = pl.program_id(1)

    @pl.when(j == 0)
    def _init():
        acc_bce_ref[...] = jnp.zeros_like(acc_bce_ref)
        acc_w_ref[...] = jnp.zeros_like(acc_w_ref)

    x = x_ref[...].astype(jnp.float32)
    t = t_ref[...].astype(jnp.float32)

    # One EUP exp shared by the stable BCE and the sigmoid.
    e = jnp.exp(-jnp.abs(x))
    inv_1pe = 1.0 / (1.0 + e)
    # binary_cross_entropy_with_logits, elementwise (numerically stable form).
    bce = jnp.maximum(x, 0.0) - x * t + jnp.log1p(e)
    # sigmoid(x) derived from the same exp.
    p = jnp.where(x >= 0.0, inv_1pe, e * inv_1pe)
    pt = p * t + (1.0 - p) * (1.0 - t)
    one_m_pt = 1.0 - pt
    w = (ALPHA * t + (1.0 - ALPHA) * (1.0 - t)) * (one_m_pt * one_m_pt)

    # Pure-VPU elementwise accumulation; cross-lane reduce only in the epilogue.
    acc_bce_ref[...] += bce
    acc_w_ref[...] += w

    @pl.when(j == pl.num_programs(1) - 1)
    def _finalize():
        sum_bce = jnp.sum(acc_bce_ref[...])
        sum_w = jnp.sum(acc_w_ref[...])
        out_ref[0, 0] = jnp.broadcast_to(sum_bce, (8, 128))
        out_ref[0, 1] = jnp.broadcast_to(sum_w, (8, 128))


def _divisors(n):
    ds = set()
    d = 1
    while d * d <= n:
        if n % d == 0:
            ds.add(d)
            ds.add(n // d)
        d += 1
    return ds


def _choose_layout(total, acc_block_bytes=2 * 1024 * 1024):
    """Pick (rows, width, block_rows, num_outer, num_inner):
    rows*width == total, width a multiple of 128 when possible, and
    block_rows*width*4 ~ acc_block_bytes (lane/sublane-dense blocks)."""
    width = None
    for w in (2048, 1024, 512, 256, 128):
        if total % w == 0:
            width = w
            break
    if width is None:
        # Ragged fallback: one full-array block (fine for small inputs).
        return 1, total, 1, 1, 1
    rows = total // width
    target_rows = max(8, acc_block_bytes // (4 * width))
    if rows <= target_rows:
        block_rows = rows
    else:
        divs = _divisors(rows)
        cands = [d for d in divs if d % 8 == 0 and d <= target_rows]
        if cands:
            block_rows = max(cands)
        else:
            cands = [d for d in divs if d % 8 == 0]
            block_rows = min(cands) if cands else rows
    num_blocks = rows // block_rows
    num_outer = next(p for p in (8, 4, 2, 1) if num_blocks % p == 0)
    num_inner = num_blocks // num_outer
    return rows, width, block_rows, num_outer, num_inner


def focal_loss_pallas(cls_preds, cls_targets):
    """Focal loss forward. cls_preds: float logits, cls_targets: labels
    (any numeric dtype, same shape). Elementwise -> flattened internally."""
    assert cls_preds.shape == cls_targets.shape
    total = math.prod(cls_preds.shape)
    rows, width, block_rows, num_outer, num_inner = _choose_layout(total)

    # Free contiguous reshapes; dtypes pass through unchanged (cast in-kernel).
    x = cls_preds.reshape(rows, width)
    t = cls_targets.reshape(rows, width)

    in_map = lambda i, j: (i * num_inner + j, 0)

    out = pl.pallas_call(
        _focal_loss_kernel,
        out_shape=jax.ShapeDtypeStruct((num_outer, 2, 8, 128), jnp.float32),
        grid_spec=pltpu.PrefetchScalarGridSpec(
            num_scalar_prefetch=0,
            grid=(num_outer, num_inner),
            in_specs=[
                pl.BlockSpec((block_rows, width), in_map),
                pl.BlockSpec((block_rows, width), in_map),
            ],
            out_specs=pl.BlockSpec((1, 2, 8, 128), lambda i, j: (i, 0, 0, 0)),
            scratch_shapes=[
                pltpu.VMEM((block_rows, width), jnp.float32),
                pltpu.VMEM((block_rows, width), jnp.float32),
            ],
        ),
        compiler_params=pltpu.CompilerParams(
            dimension_semantics=("parallel", "arbitrary"),
            vmem_limit_bytes=32 * 1024 * 1024,
        ),
        cost_estimate=pl.CostEstimate(
            flops=15 * total,
            transcendentals=3 * total,
            bytes_accessed=total
            * (cls_preds.dtype.itemsize + cls_targets.dtype.itemsize)
            + num_outer * 2 * 8 * 128 * 4,
        ),
    )(x, t)

    partial = out[:, :, 0, 0]               # (num_outer, 2) per-chunk partial sums
    sum_bce = jnp.sum(partial[:, 0])
    sum_w = jnp.sum(partial[:, 1])
    inv_n = jnp.float32(1.0 / total)
    # loss = mean(w * mean(bce)) = mean(w) * mean(bce)
    return (sum_w * inv_n) * (sum_bce * inv_n)


def focal_loss_ref(cls_preds, cls_targets):
    x = cls_preds.astype(jnp.float32)
    t = cls_targets.astype(jnp.float32)
    bce = jnp.maximum(x, 0.0) - x * t + jnp.log1p(jnp.exp(-jnp.abs(x)))
    p = jax.nn.sigmoid(x)
    pt = p * t + (1.0 - p) * (1.0 - t)
    w = (ALPHA * t + (1.0 - ALPHA) * (1.0 - t)) * (1.0 - pt) ** GAMMA
    return jnp.mean(w * jnp.mean(bce))


if __name__ == "__main__":
    key = jax.random.PRNGKey(0)
    k1, k2 = jax.random.split(key)

    N, A, NUM_CLASSES = 2, 256, 21  # [batch, #anchors]
    cls_preds = jax.random.normal(k1, (N, A), dtype=jnp.float32)
    # The reference module feeds encoded integer class labels (can be > 1)
    # straight into a BCE-based focal loss; reproduced faithfully as-is.
    cls_targets = jax.random.randint(k2, (N, A), 0, NUM_CLASSES, dtype=jnp.int32)

    loss = focal_loss_pallas(cls_preds, cls_targets)
    jax.block_until_ready(loss)

    ref = focal_loss_ref(cls_preds, cls_targets)
    assert jnp.allclose(loss, ref, rtol=1e-5, atol=1e-5), (loss, ref)

    print("KERNEL_OK")
</pallas_src>

<mosaic_0001>
module attributes {stable_mosaic.version = 11 : i64} {
  func.func @_focal_loss_kernel(%arg0: i32, %arg1: i32, %arg2: memref<1x512xf32, #tpu.memory_space<vmem>>, %arg3: memref<1x512xi32, #tpu.memory_space<vmem>>, %arg4: memref<1x2x8x128xf32, #tpu.memory_space<vmem>>, %arg5: memref<1x512xf32, #tpu.memory_space<vmem>>, %arg6: memref<1x512xf32, #tpu.memory_space<vmem>>) attributes {dimension_semantics = [#tpu.dimension_semantics<parallel>, #tpu.dimension_semantics<arbitrary>], iteration_bounds = array<i64: 1, 1>, scalar_prefetch = 0 : i64, scratch_operands = 2 : i64, tpu.core_type = #tpu.core_type<tc>, window_params = [{transform_indices = @transform_0, window_bounds = array<i64: 1, 512>}, {transform_indices = @transform_1, window_bounds = array<i64: 1, 512>}, {transform_indices = @transform_2, window_bounds = array<i64: 1, 2, 8, 128>}]} {
    %c0_i32 = arith.constant 0 : i32
    %0 = arith.cmpi eq, %arg1, %c0_i32 : i32
    %1 = arith.extui %0 : i1 to i32
    %c0_i32_0 = arith.constant 0 : i32
    %2 = arith.cmpi ne, %1, %c0_i32_0 : i32
    scf.if %2 {
      %cst_24 = arith.constant 0.000000e+00 : f32
      %51 = vector.broadcast %cst_24 : f32 to vector<1x512xf32>
      %c0_25 = arith.constant 0 : index
      %c0_26 = arith.constant 0 : index
      %52 = vector.load %arg5[%c0_25, %c0_26] : memref<1x512xf32, #tpu.memory_space<vmem>>, vector<1x512xf32>
      tpu.vector_store %arg5[%c0_25, %c0_26], %51 {strides = array<i32>} : memref<1x512xf32, #tpu.memory_space<vmem>>, vector<1x512xf32>,
      %cst_27 = arith.constant 0.000000e+00 : f32
      %53 = vector.broadcast %cst_27 : f32 to vector<1x512xf32>
      %c0_28 = arith.constant 0 : index
      %c0_29 = arith.constant 0 : index
      %54 = vector.load %arg6[%c0_28, %c0_29] : memref<1x512xf32, #tpu.memory_space<vmem>>, vector<1x512xf32>
      tpu.vector_store %arg6[%c0_28, %c0_29], %53 {strides = array<i32>} : memref<1x512xf32, #tpu.memory_space<vmem>>, vector<1x512xf32>,
    } else {
    }
    %c0 = arith.constant 0 : index
    %c0_1 = arith.constant 0 : index
    %3 = vector.load %arg2[%c0, %c0_1] : memref<1x512xf32, #tpu.memory_space<vmem>>, vector<1x512xf32>
    %c0_2 = arith.constant 0 : index
    %c0_3 = arith.constant 0 : index
    %4 = vector.load %arg3[%c0_2, %c0_3] : memref<1x512xi32, #tpu.memory_space<vmem>>, vector<1x512xi32>
    %5 = arith.sitofp %4 : vector<1x512xi32> to vector<1x512xf32>
    %6 = math.absf %3 : vector<1x512xf32>
    %cst = arith.constant 0.000000e+00 : f32
    %7 = vector.broadcast %cst : f32 to vector<1x512xf32>
    %8 = arith.subf %7, %6 : vector<1x512xf32>
    %9 = math.exp %8 : vector<1x512xf32>
    %cst_4 = arith.constant 1.000000e+00 : f32
    %10 = vector.broadcast %cst_4 : f32 to vector<1x512xf32>
    %11 = arith.addf %10, %9 : vector<1x512xf32>
    %cst_5 = arith.constant 1.000000e+00 : f32
    %12 = vector.broadcast %cst_5 : f32 to vector<1x512xf32>
    %13 = arith.divf %12, %11 : vector<1x512xf32>
    %cst_6 = arith.constant 0.000000e+00 : f32
    %14 = vector.broadcast %cst_6 : f32 to vector<1x512xf32>
    %15 = arith.maximumf %3, %14 : vector<1x512xf32>
    %16 = arith.mulf %3, %5 : vector<1x512xf32>
    %17 = arith.subf %15, %16 : vector<1x512xf32>
    %18 = math.log1p %9 : vector<1x512xf32>
    %19 = arith.addf %17, %18 : vector<1x512xf32>
    %cst_7 = arith.constant 0.000000e+00 : f32
    %20 = vector.broadcast %cst_7 : f32 to vector<1x512xf32>
    %21 = arith.cmpf oge, %3, %20 : vector<1x512xf32>
    %22 = arith.mulf %9, %13 : vector<1x512xf32>
    %23 = arith.select %21, %13, %22 : vector<1x512xi1>, vector<1x512xf32>
    %24 = arith.mulf %23, %5 : vector<1x512xf32>
    %cst_8 = arith.constant 1.000000e+00 : f32
    %25 = vector.broadcast %cst_8 : f32 to vector<1x512xf32>
    %26 = arith.subf %25, %23 : vector<1x512xf32>
    %cst_9 = arith.constant 1.000000e+00 : f32
    %27 = vector.broadcast %cst_9 : f32 to vector<1x512xf32>
    %28 = arith.subf %27, %5 : vector<1x512xf32>
    %29 = arith.mulf %26, %28 : vector<1x512xf32>
    %30 = arith.addf %24, %29 : vector<1x512xf32>
    %cst_10 = arith.constant 1.000000e+00 : f32
    %31 = vector.broadcast %cst_10 : f32 to vector<1x512xf32>
    %32 = arith.subf %31, %30 : vector<1x512xf32>
    %cst_11 = arith.constant 2.500000e-01 : f32
    %33 = vector.broadcast %cst_11 : f32 to vector<1x512xf32>
    %34 = arith.mulf %33, %5 : vector<1x512xf32>
    %cst_12 = arith.constant 1.000000e+00 : f32
    %35 = vector.broadcast %cst_12 : f32 to vector<1x512xf32>
    %36 = arith.subf %35, %5 : vector<1x512xf32>
    %cst_13 = arith.constant 7.500000e-01 : f32
    %37 = vector.broadcast %cst_13 : f32 to vector<1x512xf32>
    %38 = arith.mulf %37, %36 : vector<1x512xf32>
    %39 = arith.addf %34, %38 : vector<1x512xf32>
    %40 = arith.mulf %32, %32 : vector<1x512xf32>
    %41 = arith.mulf %39, %40 : vector<1x512xf32>
    %c0_14 = arith.constant 0 : index
    %c0_15 = arith.constant 0 : index
    %42 = vector.load %arg5[%c0_14, %c0_15] : memref<1x512xf32, #tpu.memory_space<vmem>>, vector<1x512xf32>
    %43 = arith.addf %42, %19 : vector<1x512xf32>
    %c0_16 = arith.constant 0 : index
    %c0_17 = arith.constant 0 : index
    %44 = vector.load %arg5[%c0_16, %c0_17] : memref<1x512xf32, #tpu.memory_space<vmem>>, vector<1x512xf32>
    tpu.vector_store %arg5[%c0_16, %c0_17], %43 {strides = array<i32>} : memref<1x512xf32, #tpu.memory_space<vmem>>, vector<1x512xf32>,
    %c0_18 = arith.constant 0 : index
    %c0_19 = arith.constant 0 : index
    %45 = vector.load %arg6[%c0_18, %c0_19] : memref<1x512xf32, #tpu.memory_space<vmem>>, vector<1x512xf32>
    %46 = arith.addf %45, %41 : vector<1x512xf32>
    %c0_20 = arith.constant 0 : index
    %c0_21 = arith.constant 0 : index
    %47 = vector.load %arg6[%c0_20, %c0_21] : memref<1x512xf32, #tpu.memory_space<vmem>>, vector<1x512xf32>
    tpu.vector_store %arg6[%c0_20, %c0_21], %46 {strides = array<i32>} : memref<1x512xf32, #tpu.memory_space<vmem>>, vector<1x512xf32>,
    %c0_i32_22 = arith.constant 0 : i32
    %48 = arith.cmpi eq, %arg1, %c0_i32_22 : i32
    %49 = arith.extui %48 : i1 to i32
    %c0_i32_23 = arith.constant 0 : i32
    %50 = arith.cmpi ne, %49, %c0_i32_23 : i32
    scf.if %50 {
      %c0_24 = arith.constant 0 : index
      %c0_25 = arith.constant 0 : index
      %51 = vector.load %arg5[%c0_24, %c0_25] : memref<1x512xf32, #tpu.memory_space<vmem>>, vector<1x512xf32>
      %52 = vector.shape_cast %51 : vector<1x512xf32> to vector<1x1x512xf32>
      %cst_26 = arith.constant dense<0.000000e+00> : vector<1xf32>
      %53 = vector.multi_reduction <add>, %52, %cst_26 [1, 2] : vector<1x1x512xf32> to vector<1xf32>
      %54 = vector.shape_cast %53 : vector<1xf32> to vector<1x1x1xf32>
      %55 = vector.extract %54[0, 0, 0] : f32 from vector<1x1x1xf32>
      %c0_27 = arith.constant 0 : index
      %c0_28 = arith.constant 0 : index
      %56 = vector.load %arg6[%c0_27, %c0_28] : memref<1x512xf32, #tpu.memory_space<vmem>>, vector<1x512xf32>
      %57 = vector.shape_cast %56 : vector<1x512xf32> to vector<1x1x512xf32>
      %cst_29 = arith.constant dense<0.000000e+00> : vector<1xf32>
      %58 = vector.multi_reduction <add>, %57, %cst_29 [1, 2] : vector<1x1x512xf32> to vector<1xf32>
      %59 = vector.shape_cast %58 : vector<1xf32> to vector<1x1x1xf32>
      %60 = vector.extract %59[0, 0, 0] : f32 from vector<1x1x1xf32>
      %61 = vector.broadcast %55 : f32 to vector<8x128xf32>
      %c0_30 = arith.constant 0 : index
      %c0_31 = arith.constant 0 : index
      %c0_32 = arith.constant 0 : index
      %c0_33 = arith.constant 0 : index
      %62 = vector.load %arg4[%c0_30, %c0_31, %c0_32, %c0_33] : memref<1x2x8x128xf32, #tpu.memory_space<vmem>>, vector<1x1x8x128xf32>
      %63 = vector.shape_cast %62 : vector<1x1x8x128xf32> to vector<8x128xf32>
      %64 = vector.shape_cast %61 : vector<8x128xf32> to vector<1x1x8x128xf32>
      tpu.vector_store %arg4[%c0_30, %c0_31, %c0_32, %c0_33], %64 {strides = array<i32>} : memref<1x2x8x128xf32, #tpu.memory_space<vmem>>, vector<1x1x8x128xf32>,
      %65 = vector.broadcast %60 : f32 to vector<8x128xf32>
      %c0_34 = arith.constant 0 : index
      %c1 = arith.constant 1 : index
      %c0_35 = arith.constant 0 : index
      %c0_36 = arith.constant 0 : index
      %66 = vector.load %arg4[%c0_34, %c1, %c0_35, %c0_36] : memref<1x2x8x128xf32, #tpu.memory_space<vmem>>, vector<1x1x8x128xf32>
      %67 = vector.shape_cast %66 : vector<1x1x8x128xf32> to vector<8x128xf32>
      %68 = vector.shape_cast %65 : vector<8x128xf32> to vector<1x1x8x128xf32>
      tpu.vector_store %arg4[%c0_34, %c1, %c0_35, %c0_36], %68 {strides = array<i32>} : memref<1x2x8x128xf32, #tpu.memory_space<vmem>>, vector<1x1x8x128xf32>,
    } else {
    }
    return
  }
  func.func @transform_0(%arg0: i32, %arg1: i32) -> (i32, i32) {
    %c1_i32 = arith.constant 1 : i32
    %0 = arith.muli %arg0, %c1_i32 : i32
    %1 = arith.addi %0, %arg1 : i32
    %c0_i32 = arith.constant 0 : i32
    %c0_i32_0 = arith.constant 0 : i32
    return %1, %c0_i32 : i32, i32
  }
  func.func @transform_1(%arg0: i32, %arg1: i32) -> (i32, i32) {
    %c1_i32 = arith.constant 1 : i32
    %0 = arith.muli %arg0, %c1_i32 : i32
    %1 = arith.addi %0, %arg1 : i32
    %c0_i32 = arith.constant 0 : i32
    %c0_i32_0 = arith.constant 0 : i32
    return %1, %c0_i32 : i32, i32
  }
  func.func @transform_2(%arg0: i32, %arg1: i32) -> (i32, i32, i32, i32) {
    %c0_i32 = arith.constant 0 : i32
    %c0_i32_0 = arith.constant 0 : i32
    %c0_i32_1 = arith.constant 0 : i32
    %c0_i32_2 = arith.constant 0 : i32
    return %arg0, %c0_i32, %c0_i32_0, %c0_i32_1 : i32, i32, i32, i32
  }
}

</mosaic_0001>

<llo_original>
// kernel: tpu_custom_call.1
$region0: #{tpu_custom_call.1}
  #allocation0 [shape = 'u32[]', space=smem, size = 0x4, offset = 0x4, fixed_abs, tag = 'smem constant byte address 0x4 - core index']
  #allocation1 [shape = 'u32[144,128]{1,0:T(1,128)}', space=vmem, size = 0x12000, scoped, tag = 'internal scratch']
  #allocation2 [shape = 'f32[1,512]{1,0:T(1,128)}', space=vmem, size = 0x800, scoped, tag = 'scratch operand']
  #allocation3 [shape = 'f32[1,512]{1,0:T(1,128)}', space=vmem, size = 0x800, scoped, tag = 'scratch operand']
  %s0 = inlined_call_operand.hbm [shape: f32[1,512], index: 0, kind: input, shape index: {}]
  %s1 = inlined_call_operand.hbm [shape: s32[1,512], index: 1, kind: input, shape index: {}]
  %s2 = inlined_call_operand.hbm [shape: f32[1,2,8,128], index: 2, kind: output, shape index: {}]
  %s3 = sld [smem:[#allocation0]]
  $region34: #{tpu_custom_call.1} parent=0
    _
  %s5 = ssub.s32 1, %s3
  %s6 = scalar_select 0, %s5, %s3
  $region1: #{tpu_custom_call.1} parent=0
    #allocation4 [shape = 'u8[2048]{0}', space=vmem, size = 0x800, scoped, tag = 'input window, operand 0, single buffered']
    #allocation5 [shape = 's32[1]{0}', space=sflag, size = 0x4, scoped, tag = 'scoped memory for tpu_custom_call.1']
    #allocation6 [shape = 's32[1]{0}', space=sflag, size = 0x4, scoped, tag = 'scoped memory for tpu_custom_call.1']
    #allocation7 [shape = 'u8[2048]{0}', space=vmem, size = 0x800, scoped, tag = 'input window, operand 1, single buffered']
    #allocation8 [shape = 's32[1]{0}', space=sflag, size = 0x4, scoped, tag = 'scoped memory for tpu_custom_call.1']
    #allocation9 [shape = 'u8[8192]{0}', space=vmem, size = 0x2000, scoped, tag = 'output window, operand 0, single buffered']
    %7 = vsyncpa [#allocation5], 0
    %8 = vsyncpa [#allocation8], 0
    %9 = vsyncpa [#allocation6], 0
    // Predicated region
    $region2: #{tpu_custom_call.1} parent=1 // pred_check
      _
    $region3: #{tpu_custom_call.1} parent=1 // pred_check_branch
      %11 = sbr.rel (0) target = $region5
    $region4: #{tpu_custom_call.1} parent=1 // pred_region
      %s12 = sadd.s32 0, 0
      %s14 = ssub.s32 64, 64
      %15 = vsyncadd [#allocation5], %s14
      %s16 = smul.addr %s12, 4
      %s17 = smul.addr %s16, 16
      %s18 = scalar_lea.hbm %s0, %s17
      %s20 = sshll.u32 [#allocation4], 4
      %s21 = int_to_ptr.vmem [resolvable:$true] %s20
      %23 = dma.hbm_to_vmem [thread:$0]  %s18, 64, %s21, [#allocation5]
    $region5: #{tpu_custom_call.1} parent=1 // pred_fallthru
      _
    // Predicated region
    $region6: #{tpu_custom_call.1} parent=1 // pred_check
      _
    $region7: #{tpu_custom_call.1} parent=1 // pred_check_branch
      %25 = sbr.rel (0) target = $region9
    $region8: #{tpu_custom_call.1} parent=1 // pred_region
      %s26 = sadd.s32 0, 0
      %s28 = ssub.s32 64, 64
      %29 = vsyncadd [#allocation8], %s28
      %s30 = smul.addr %s26, 4
      %s31 = smul.addr %s30, 16
      %s32 = scalar_lea.hbm %s1, %s31
      %s34 = sshll.u32 [#allocation7], 4
      %s35 = int_to_ptr.vmem [resolvable:$true] %s34
      %37 = dma.hbm_to_vmem [thread:$0]  %s32, 64, %s35, [#allocation8]
    $region9: #{tpu_custom_call.1} parent=1 // pred_fallthru
      _
    // Predicated region
    $region10: #{tpu_custom_call.1} parent=1 // pred_check
      _
    $region11: #{tpu_custom_call.1} parent=1 // pred_check_branch
      %39 = sbr.rel (0) target = $region13
    $region12: #{tpu_custom_call.1} parent=1 // pred_region
      %40 = dma.done [#allocation5], 64
    $region13: #{tpu_custom_call.1} parent=1 // pred_fallthru
      _
    // Predicated region
    $region14: #{tpu_custom_call.1} parent=1 // pred_check
      _
    $region15: #{tpu_custom_call.1} parent=1 // pred_check_branch
      %42 = sbr.rel (0) target = $region17
    $region16: #{tpu_custom_call.1} parent=1 // pred_region
      %43 = dma.done [#allocation8], 64
    $region17: #{tpu_custom_call.1} parent=1 // pred_fallthru
      _
    %s44 = sadd.s32 0, 0
    %s45 = sadd.s32 0, 0
    %p46 = scmp.eq.s32.totalorder 0, 0
    // Predicated region
    $region18: #{tpu_custom_call.1} parent=1 // pred_check
      %p47 = pneg %p46
    $region19: #{tpu_custom_call.1} parent=1 // pred_check_branch
      %49 = sbr.rel (%p47) target = $region21
    $region20: #{tpu_custom_call.1} parent=1 // pred_region
      %v50 = vlaneseq
      %vm51 = vcmp.ge.s32.totalorder %v50, 0
      %vm52 = vcmp.lt.s32.totalorder %v50, 512
      %vm53 = vmand %vm51, %vm52
      %54 = vst.msk [vmem:[#allocation2] sm:$0xf] %vm53, 0.0
      %55 = vst.msk [vmem:[#allocation3] sm:$0xf] %vm53, 0.0
    $region21: #{tpu_custom_call.1} parent=1 // pred_fallthru
      _
    %v56 = vld [vmem:[#allocation4] sm:$0xf]
    %v57 = vld [vmem:[#allocation7] sm:$0xf]
    %v58 = vcvt.s32.f32 %v57
    %v59 = vand.u32 2147483647, %v56
    %v60 = vsub.f32 0.0, %v59
    %v61 = vmul.f32 %v60, 1.442695
    %v62 = vpow.pop %v61
    %v63 = vadd.f32 %v62, 1.0
    %v64 = vrcp.pop %v63
    %v65 = vmul.f32 1.0, %v64
    %v66 = vmax.f32 %v56, 0.0
    %v67 = vmul.f32 %v56, %v58
    %v68 = vsub.f32 %v66, %v67
    %v69 = vadd.f32 %v62, 1.0
    %v70 = vlog2.pop %v69
    %v71 = vmul.f32 %v70, 0.6931472
    %v72 = vmul.f32 -0.5, %v62
    %v73 = vadd.f32 %v72, 1.0
    %v74 = vmul.f32 %v73, %v62
    %v75 = vand.u32 2147483647, %v62
    %vm76 = vcmp.lt.f32.partialorder %v75, 0.0004427343
    %v77 = vsel %vm76, %v74, %v71
    %v78 = vadd.f32 %v68, %v77
    %vm79 = vcmp.ge.f32.partialorder %v56, 0.0
    %v80 = vmul.f32 %v62, %v65
    %v81 = vsel %vm79, %v65, %v80
    %v82 = vmul.f32 %v81, %v58
    %v83 = vsub.f32 1.0, %v81
    %v84 = vsub.f32 1.0, %v58
    %v85 = vmul.f32 %v83, %v84
    %v86 = vadd.f32 %v82, %v85
    %v87 = vsub.f32 1.0, %v86
    %v88 = vmul.f32 %v58, 0.25
    %v89 = vmul.f32 %v84, 0.75
    %v90 = vadd.f32 %v88, %v89
    %v91 = vmul.f32 %v87, %v87
    %v92 = vmul.f32 %v90, %v91
    %v93 = vld [vmem:[#allocation2] sm:$0xf]
    %v94 = vadd.f32 %v93, %v78
    %v95 = vlaneseq
    %vm96 = vcmp.ge.s32.totalorder %v95, 0
    %vm97 = vcmp.lt.s32.totalorder %v95, 512
    %vm98 = vmand %vm96, %vm97
    %99 = vst.msk [vmem:[#allocation2] sm:$0xf] %vm98, %v94
    %v100 = vld [vmem:[#allocation3] sm:$0xf]
    %v101 = vadd.f32 %v100, %v92
    %102 = vst.msk [vmem:[#allocation3] sm:$0xf] %vm98, %v101
    // Predicated region
    $region22: #{tpu_custom_call.1} parent=1 // pred_check
      %p103 = pneg %p46
    $region23: #{tpu_custom_call.1} parent=1 // pred_check_branch
      %105 = sbr.rel (%p103) target = $region25
    $region24: #{tpu_custom_call.1} parent=1 // pred_region
      %v106 = vld [vmem:[#allocation2] sm:$0xf]
      %v108 = vlaneseq
      %v109 = vshrl.u32 %v108, 7
      %v110 = vsub.s32 0, %v109
      %v111 = vrot.slane %v106, %v110
      %v112 = vlaneseq
      %v113 = vshrl.u32 %v112, 7
      %v114 = vsub.s32 1, %v113
      %v115 = vrot.slane %v106, %v114
      %v116 = vlaneseq
      %v117 = vshrl.u32 %v116, 7
      %v118 = vsub.s32 2, %v117
      %v119 = vrot.slane %v106, %v118
      %v120 = vlaneseq
      %v121 = vshrl.u32 %v120, 7
      %v122 = vsub.s32 3, %v121
      %v123 = vrot.slane %v106, %v122
      %vm128 = vcmask 1040384
      %v129 = vsel %vm128, %v111, 0.0
      %v130 = vsel %vm128, %v115, 0.0
      %v131 = vadd.f32 %v129, %v130
      %v132 = vsel %vm128, %v119, 0.0
      %v133 = vadd.f32 %v131, %v132
      %v134 = vsel %vm128, %v123, 0.0
      %v135 = vadd.f32 %v133, %v134
      %136 = vadd.xlane.f32.xlu0 %v135
      %v137 = vpop.xlane.xlu0 %136
      %v138 = vrot.slane %v137, 4
      %v139 = vadd.f32 %v137, %v138
      %v140 = vrot.slane %v139, 2
      %v141 = vadd.f32 %v139, %v140
      %v142 = vrot.slane %v141, 1
      %v143 = vadd.f32 %v141, %v142
      %s144 = vtos %v143
      %v145 = vld [vmem:[#allocation3] sm:$0xf]
      %v147 = vlaneseq
      %v148 = vshrl.u32 %v147, 7
      %v149 = vsub.s32 0, %v148
      %v150 = vrot.slane %v145, %v149
      %v151 = vlaneseq
      %v152 = vshrl.u32 %v151, 7
      %v153 = vsub.s32 1, %v152
      %v154 = vrot.slane %v145, %v153
      %v155 = vlaneseq
      %v156 = vshrl.u32 %v155, 7
      %v157 = vsub.s32 2, %v156
      %v158 = vrot.slane %v145, %v157
      %v159 = vlaneseq
      %v160 = vshrl.u32 %v159, 7
      %v161 = vsub.s32 3, %v160
      %v162 = vrot.slane %v145, %v161
      %v167 = vsel %vm128, %v150, 0.0
      %v168 = vsel %vm128, %v154, 0.0
      %v169 = vadd.f32 %v167, %v168
      %v170 = vsel %vm128, %v158, 0.0
      %v171 = vadd.f32 %v169, %v170
      %v172 = vsel %vm128, %v162, 0.0
      %v173 = vadd.f32 %v171, %v172
      %174 = vadd.xlane.f32.xlu0 %v173
      %v175 = vpop.xlane.xlu0 %174
      %v176 = vrot.slane %v175, 4
      %v177 = vadd.f32 %v175, %v176
      %v178 = vrot.slane %v177, 2
      %v179 = vadd.f32 %v177, %v178
      %v180 = vrot.slane %v179, 1
      %v181 = vadd.f32 %v179, %v180
      %s182 = vtos %v181
      %v183 = vstv %s144
      %184 = vst [vmem:[#allocation9] sm:$0xff] %v183
      %v185 = vstv %s182
      %s186 = scalar_lea.vmem [#allocation9], 8
      %187 = vst [vmem:[%s186] sm:$0xff] %v185
    $region25: #{tpu_custom_call.1} parent=1 // pred_fallthru
      _
    // Predicated region
    $region26: #{tpu_custom_call.1} parent=1 // pred_check
      _
    $region27: #{tpu_custom_call.1} parent=1 // pred_check_branch
      %189 = sbr.rel (0) target = $region29
    $region28: #{tpu_custom_call.1} parent=1 // pred_region
      %s191 = ssub.s32 256, 256
      %192 = vsyncadd [#allocation6], %s191
      %s193 = sshll.u32 [#allocation9], 4
      %s194 = int_to_ptr.vmem [resolvable:$true] %s193
      %199 = dma.vmem_to_hbm [thread:$0]  %s194, 256, %s2, [#allocation6], 128, 128, 8
    $region29: #{tpu_custom_call.1} parent=1 // pred_fallthru
      _
    // Predicated region
    $region30: #{tpu_custom_call.1} parent=1 // pred_check
      _
    $region31: #{tpu_custom_call.1} parent=1 // pred_check_branch
      %201 = sbr.rel (0) target = $region33
    $region32: #{tpu_custom_call.1} parent=1 // pred_region
      %202 = dma.done [#allocation6], 256
    $region33: #{tpu_custom_call.1} parent=1 // pred_fallthru
      _
    %203 = vsyncpa [#allocation5], 1
    %204 = vsyncpa [#allocation8], 1
    %205 = vsyncpa [#allocation6], 1

</llo_original>
